<compile_context>
chip_gen: v6e
topology: v6e:2x2x1
jax: 0.10.0
libtpu: 0.0.40
codegen_flags: <defaults>
</compile_context>

<pallas_src>
import jax
import jax.numpy as jnp
from jax.experimental import pallas as pl
from jax.experimental.pallas import tpu as pltpu


def _mlp_mean_kernel(x_ref, w1_ref, b1_ref, w2t_ref, b2_ref, out_ref):
    # Everything fits in one VMEM tile; no grid, no scratch.
    x = x_ref[...].astype(jnp.float32)       # (B, 2)
    w1 = w1_ref[...].astype(jnp.float32)     # (2, 200)
    b1 = b1_ref[...].astype(jnp.float32)     # (1, 200)
    w2 = w2t_ref[...].astype(jnp.float32)    # (1, 200) lane-dense row of linear2 weight

    # Linear1 on the VPU: expand the (B,2)x(2,200) dot into two
    # broadcast-multiplies + adds (avoids MXU latency for K=2).
    h = x[:, 0:1] * w1[0:1, :] + x[:, 1:2] * w1[1:2, :] + b1     # (B, 200)

    # Linear2 (N=1) fused with the mean over the batch:
    #   mean_B(h @ w2 + b2) = sum(h * w2_row) / B + b2
    inv_b = 1.0 / x_ref.shape[0]                                  # static Python float
    total = jnp.sum(h * w2, keepdims=True)                        # (1, 1)
    out_ref[...] = total * inv_b + b2_ref[0]                      # b2 scalar from SMEM


def mlp_mean(x, w1, b1, w2, b2):
    """x: (B, 2) float32. w1: (2,200), b1: (1,200), w2: (200,1), b2: (1,).

    Returns scalar float32 = mean(linear2(linear1(x))).
    """
    x = x.astype(jnp.float32)                 # mirrors `batch.float()` in the module
    w2t = w2.reshape(1, -1)                   # (200,1) -> (1,200): lane-dense for the VPU
    b2s = b2.reshape(-1)                      # (1,) scalar for SMEM
    out = pl.pallas_call(
        _mlp_mean_kernel,
        out_shape=jax.ShapeDtypeStruct((1, 1), jnp.float32),
        in_specs=[
            pl.BlockSpec(memory_space=pltpu.MemorySpace.VMEM),   # x
            pl.BlockSpec(memory_space=pltpu.MemorySpace.VMEM),   # w1
            pl.BlockSpec(memory_space=pltpu.MemorySpace.VMEM),   # b1
            pl.BlockSpec(memory_space=pltpu.MemorySpace.VMEM),   # w2 (row)
            pl.BlockSpec(memory_space=pltpu.MemorySpace.SMEM),   # b2 scalar
        ],
        out_specs=pl.BlockSpec(memory_space=pltpu.MemorySpace.VMEM),
    )(x, w1, b1, w2t, b2s)
    return out[0, 0]


def init_params(key):
    """Deterministic init mimicking PyTorch nn.Linear default (uniform +-1/sqrt(fan_in))."""
    k1, k2, k3, k4 = jax.random.split(key, 4)
    bound1 = 1.0 / jnp.sqrt(2.0)      # fan_in = 2
    bound2 = 1.0 / jnp.sqrt(200.0)    # fan_in = 200
    # Stored already transposed relative to PyTorch: (in, out).
    w1 = jax.random.uniform(k1, (2, 200), jnp.float32, -bound1, bound1)
    b1 = jax.random.uniform(k2, (1, 200), jnp.float32, -bound1, bound1)
    w2 = jax.random.uniform(k3, (200, 1), jnp.float32, -bound2, bound2)
    b2 = jax.random.uniform(k4, (1,), jnp.float32, -bound2, bound2)
    return w1, b1, w2, b2


if __name__ == "__main__":
    key = jax.random.PRNGKey(0)
    kx, kp = jax.random.split(key)

    B = 8  # small batch
    x = jax.random.normal(kx, (B, 2), jnp.float32)
    w1, b1, w2, b2 = init_params(kp)

    result = mlp_mean(x, w1, b1, w2, b2)
    jax.block_until_ready(result)

    # Reference check in plain JAX (same math as the PyTorch forward).
    ref = jnp.mean((x @ w1 + b1) @ w2 + b2.reshape(1, 1))
    assert jnp.allclose(result, ref, atol=1e-5, rtol=1e-5), (result, ref)

    print("KERNEL_OK")
</pallas_src>

<mosaic_0001>
module attributes {stable_mosaic.version = 11 : i64} {
  func.func @_mlp_mean_kernel(%arg0: memref<8x2xf32, #tpu.memory_space<vmem>>, %arg1: memref<2x200xf32, #tpu.memory_space<vmem>>, %arg2: memref<1x200xf32, #tpu.memory_space<vmem>>, %arg3: memref<1x200xf32, #tpu.memory_space<vmem>>, %arg4: memref<1xf32, #tpu.memory_space<smem>>, %arg5: memref<1x1xf32, #tpu.memory_space<vmem>>) attributes {dimension_semantics = [], scalar_prefetch = 0 : i64, scratch_operands = 0 : i64, tpu.core_type = #tpu.core_type<tc>} {
    %c0 = arith.constant 0 : index
    %c0_0 = arith.constant 0 : index
    %0 = vector.load %arg0[%c0, %c0_0] : memref<8x2xf32, #tpu.memory_space<vmem>>, vector<8x2xf32>
    %c0_1 = arith.constant 0 : index
    %c0_2 = arith.constant 0 : index
    %1 = vector.load %arg1[%c0_1, %c0_2] : memref<2x200xf32, #tpu.memory_space<vmem>>, vector<2x200xf32>
    %c0_3 = arith.constant 0 : index
    %c0_4 = arith.constant 0 : index
    %2 = vector.load %arg2[%c0_3, %c0_4] : memref<1x200xf32, #tpu.memory_space<vmem>>, vector<1x200xf32>
    %c0_5 = arith.constant 0 : index
    %c0_6 = arith.constant 0 : index
    %3 = vector.load %arg3[%c0_5, %c0_6] : memref<1x200xf32, #tpu.memory_space<vmem>>, vector<1x200xf32>
    %4 = vector.extract_strided_slice %0 {offsets = [0, 0], sizes = [8, 1], strides = [1, 1]} : vector<8x2xf32> to vector<8x1xf32>
    %5 = vector.extract_strided_slice %1 {offsets = [0, 0], sizes = [1, 200], strides = [1, 1]} : vector<2x200xf32> to vector<1x200xf32>
    %6 = vector.broadcast %4 : vector<8x1xf32> to vector<8x200xf32>
    %7 = vector.broadcast %5 : vector<1x200xf32> to vector<8x200xf32>
    %8 = arith.mulf %6, %7 : vector<8x200xf32>
    %9 = vector.extract_strided_slice %0 {offsets = [0, 1], sizes = [8, 1], strides = [1, 1]} : vector<8x2xf32> to vector<8x1xf32>
    %10 = vector.extract_strided_slice %1 {offsets = [1, 0], sizes = [1, 200], strides = [1, 1]} : vector<2x200xf32> to vector<1x200xf32>
    %11 = vector.broadcast %9 : vector<8x1xf32> to vector<8x200xf32>
    %12 = vector.broadcast %10 : vector<1x200xf32> to vector<8x200xf32>
    %13 = arith.mulf %11, %12 : vector<8x200xf32>
    %14 = arith.addf %8, %13 : vector<8x200xf32>
    %15 = vector.broadcast %2 : vector<1x200xf32> to vector<8x200xf32>
    %16 = arith.addf %14, %15 : vector<8x200xf32>
    %17 = vector.broadcast %3 : vector<1x200xf32> to vector<8x200xf32>
    %18 = arith.mulf %16, %17 : vector<8x200xf32>
    %19 = vector.shape_cast %18 : vector<8x200xf32> to vector<1x8x200xf32>
    %cst = arith.constant dense<0.000000e+00> : vector<1xf32>
    %20 = vector.multi_reduction <add>, %19, %cst [1, 2] : vector<1x8x200xf32> to vector<1xf32>
    %21 = vector.shape_cast %20 : vector<1xf32> to vector<1x1x1xf32>
    %22 = vector.extract %21[0, 0, 0] : f32 from vector<1x1x1xf32>
    %23 = vector.broadcast %22 : f32 to vector<1x1xf32>
    %cst_7 = arith.constant 1.250000e-01 : f32
    %24 = vector.broadcast %cst_7 : f32 to vector<1x1xf32>
    %25 = arith.mulf %23, %24 : vector<1x1xf32>
    %c0_8 = arith.constant 0 : index
    %26 = memref.load %arg4[%c0_8] : memref<1xf32, #tpu.memory_space<smem>>
    %27 = vector.broadcast %26 : f32 to vector<1x1xf32>
    %28 = arith.addf %25, %27 : vector<1x1xf32>
    %c0_9 = arith.constant 0 : index
    %c0_10 = arith.constant 0 : index
    %29 = vector.load %arg5[%c0_9, %c0_10] : memref<1x1xf32, #tpu.memory_space<vmem>>, vector<1x1xf32>
    tpu.vector_store %arg5[%c0_9, %c0_10], %28 {strides = array<i32>} : memref<1x1xf32, #tpu.memory_space<vmem>>, vector<1x1xf32>,
    return
  }
}

</mosaic_0001>

<llo_original>
// kernel: tpu_custom_call.1
$region0: #{tpu_custom_call.1}
  #allocation0 [shape = 'u32[]', space=smem, size = 0x4, offset = 0x4, fixed_abs, tag = 'smem constant byte address 0x4 - core index']
  #allocation1 [shape = 'u32[144,128]{1,0:T(1,128)}', space=vmem, size = 0x12000, scoped, tag = 'internal scratch']
  #allocation2 [shape = 'f32[1]{0:T(128)S(6)}', space=smem, size = 0x200, scoped, tag = 'scoped memory for tpu_custom_call.1']
  %s0 = inlined_call_operand.vmem [shape: f32[8,2], index: 0, kind: input, shape index: {}]
  %s1 = inlined_call_operand.vmem [shape: f32[2,200], index: 1, kind: input, shape index: {}]
  %s2 = inlined_call_operand.vmem [shape: f32[1,200], index: 2, kind: input, shape index: {}]
  %s3 = inlined_call_operand.vmem [shape: f32[1,200], index: 3, kind: input, shape index: {}]
  %s4 = inlined_call_operand.<no memory space> [shape: f32[1], index: 4, kind: input, shape index: {}]
  %s5 = inlined_call_operand.hbm [shape: f32[1,1], index: 5, kind: output, shape index: {}]
  %s6 = sld [smem:[#allocation0]]
  $region30: #{tpu_custom_call.1} parent=0
    _
  %s8 = ssub.s32 1, %s6
  %s9 = scalar_select 0, %s8, %s6
  %10 = sst [smem:[#allocation2]] %s4
  $region1: #{tpu_custom_call.1} parent=0
    #allocation3 [shape = 'u8[512]{0}', space=vmem, size = 0x400, scoped, tag = 'output window, operand 0, single buffered']
    #allocation4 [shape = 's32[1]{0}', space=sflag, size = 0x4, scoped, tag = 'scoped memory for tpu_custom_call.1']
    %11 = vsyncpa [#allocation4], 0
    // Predicated region
    $region2: #{tpu_custom_call.1} parent=1 // pred_check
      _
    $region3: #{tpu_custom_call.1} parent=1 // pred_check_branch
      %13 = sbr.rel (0) target = $region5
    $region4: #{tpu_custom_call.1} parent=1 // pred_region
      _
    $region5: #{tpu_custom_call.1} parent=1 // pred_fallthru
      _
    // Predicated region
    $region6: #{tpu_custom_call.1} parent=1 // pred_check
      _
    $region7: #{tpu_custom_call.1} parent=1 // pred_check_branch
      %15 = sbr.rel (0) target = $region9
    $region8: #{tpu_custom_call.1} parent=1 // pred_region
      _
    $region9: #{tpu_custom_call.1} parent=1 // pred_fallthru
      _
    // Predicated region
    $region10: #{tpu_custom_call.1} parent=1 // pred_check
      _
    $region11: #{tpu_custom_call.1} parent=1 // pred_check_branch
      %17 = sbr.rel (0) target = $region13
    $region12: #{tpu_custom_call.1} parent=1 // pred_region
      _
    $region13: #{tpu_custom_call.1} parent=1 // pred_fallthru
      _
    // Predicated region
    $region14: #{tpu_custom_call.1} parent=1 // pred_check
      _
    $region15: #{tpu_custom_call.1} parent=1 // pred_check_branch
      %19 = sbr.rel (0) target = $region17
    $region16: #{tpu_custom_call.1} parent=1 // pred_region
      _
    $region17: #{tpu_custom_call.1} parent=1 // pred_fallthru
      _
    // Predicated region
    $region18: #{tpu_custom_call.1} parent=1 // pred_check
      _
    $region19: #{tpu_custom_call.1} parent=1 // pred_check_branch
      %21 = sbr.rel (0) target = $region21
    $region20: #{tpu_custom_call.1} parent=1 // pred_region
      _
    $region21: #{tpu_custom_call.1} parent=1 // pred_fallthru
      _
    %v22 = vld [vmem:[%s0] sm:$0xff]
    %v23 = vld [vmem:[%s1] sm:$0xf]
    %v24 = vld [vmem:[%s2] sm:$0x3]
    %v25 = vld [vmem:[%s3] sm:$0x3]
    %27 = vset.pattern.permute.xlu0 0
    %28 = vperm.xlu0 %27, %v22
    %v29 = vpop.permute.xlu0 %28
    %v32 = vlaneseq
    %v33 = vshrl.u32 %v32, 7
    %v34 = vsub.s32 0, %v33
    %v35 = vrot.slane %v23, %v34
    %v36 = vlaneseq
    %v37 = vshrl.u32 %v36, 7
    %v38 = vsub.s32 2, %v37
    %v39 = vrot.slane %v23, %v38
    %v42 = vlaneseq
    %v43 = vshrl.u32 %v42, 7
    %v44 = vsub.s32 0, %v43
    %v45 = vrot.slane %v35, %v44
    %v46 = vlaneseq
    %v47 = vshrl.u32 %v46, 7
    %v48 = vsub.s32 0, %v47
    %v49 = vrot.slane %v39, %v48
    %v50 = vmul.f32 %v29, %v45
    %v51 = vmul.f32 %v29, %v49
    %52 = vset.pattern.permute.xlu0 1
    %53 = vperm.xlu0 %52, %v22
    %v54 = vpop.permute.xlu0 %53
    %v56 = vlaneseq
    %v57 = vshrl.u32 %v56, 7
    %v58 = vsub.s32 1, %v57
    %v59 = vrot.slane %v23, %v58
    %v60 = vlaneseq
    %v61 = vshrl.u32 %v60, 7
    %v62 = vsub.s32 3, %v61
    %v63 = vrot.slane %v23, %v62
    %v66 = vlaneseq
    %v67 = vshrl.u32 %v66, 7
    %v68 = vsub.s32 1, %v67
    %v69 = vrot.slane %v59, %v68
    %v70 = vlaneseq
    %v71 = vshrl.u32 %v70, 7
    %v72 = vsub.s32 1, %v71
    %v73 = vrot.slane %v63, %v72
    %v74 = vmul.f32 %v54, %v69
    %v75 = vmul.f32 %v54, %v73
    %v76 = vadd.f32 %v50, %v74
    %v77 = vadd.f32 %v51, %v75
    %v79 = vlaneseq
    %v80 = vshrl.u32 %v79, 7
    %v81 = vsub.s32 0, %v80
    %v82 = vrot.slane %v24, %v81
    %v83 = vlaneseq
    %v84 = vshrl.u32 %v83, 7
    %v85 = vsub.s32 1, %v84
    %v86 = vrot.slane %v24, %v85
    %v89 = vadd.f32 %v76, %v82
    %v90 = vadd.f32 %v77, %v86
    %v92 = vlaneseq
    %v93 = vshrl.u32 %v92, 7
    %v94 = vsub.s32 0, %v93
    %v95 = vrot.slane %v25, %v94
    %v96 = vlaneseq
    %v97 = vshrl.u32 %v96, 7
    %v98 = vsub.s32 1, %v97
    %v99 = vrot.slane %v25, %v98
    %v102 = vmul.f32 %v89, %v95
    %v103 = vmul.f32 %v90, %v99
    %vm104 = vcmask 588800
    %v105 = vsel %vm104, %v103, 0.0
    %v106 = vadd.f32 %v102, %v105
    %107 = vadd.xlane.f32.xlu0 %v106
    %v108 = vpop.xlane.xlu0 %107
    %v109 = vrot.slane %v108, 4
    %v110 = vadd.f32 %v108, %v109
    %v111 = vrot.slane %v110, 2
    %v112 = vadd.f32 %v110, %v111
    %v113 = vrot.slane %v112, 1
    %v114 = vadd.f32 %v112, %v113
    %s115 = vtos %v114
    %v116 = vstv %s115
    %v117 = vmul.f32 %v116, 0.125
    %s118 = sld [smem:[#allocation2]]
    %v119 = vstv %s118
    %v120 = vadd.f32 %v117, %v119
    %vm121 = vcmask 0
    %122 = vst.msk [vmem:[#allocation3] sm:$0x1] %vm121, %v120
    // Predicated region
    $region22: #{tpu_custom_call.1} parent=1 // pred_check
      _
    $region23: #{tpu_custom_call.1} parent=1 // pred_check_branch
      %124 = sbr.rel (0) target = $region25
    $region24: #{tpu_custom_call.1} parent=1 // pred_region
      %s126 = ssub.s32 16, 16
      %127 = vsyncadd [#allocation4], %s126
      %s129 = sshll.u32 [#allocation3], 4
      %s130 = int_to_ptr.vmem [resolvable:$true] %s129
      %132 = dma.vmem_to_hbm [thread:$0]  %s130, 16, %s5, [#allocation4]
    $region25: #{tpu_custom_call.1} parent=1 // pred_fallthru
      _
    // Predicated region
    $region26: #{tpu_custom_call.1} parent=1 // pred_check
      _
    $region27: #{tpu_custom_call.1} parent=1 // pred_check_branch
      %134 = sbr.rel (0) target = $region29
    $region28: #{tpu_custom_call.1} parent=1 // pred_region
      %135 = dma.done [#allocation4], 16
    $region29: #{tpu_custom_call.1} parent=1 // pred_fallthru
      _
    %136 = vsyncpa [#allocation4], 1

</llo_original>
